<compile_context>
chip_gen: v7x
topology: tpu7x:2x2x1
jax: 0.10.0
libtpu: 0.0.40
codegen_flags: <defaults>
</compile_context>

<pallas_src>
import jax
import jax.numpy as jnp
from jax.experimental import pallas as pl
from jax.experimental.pallas import tpu as pltpu


# ---------------------------------------------------------------------------
# helpers
# ---------------------------------------------------------------------------
_MIB = 1024 * 1024


def _round_up(x, m):
    return ((x + m - 1) // m) * m


def _pick_tile(dim, target, granule):
    """Largest tile <= target that is a multiple of `granule` and covers dim."""
    return min(target, _round_up(dim, granule))


def _pick_tm(m, target):
    """Row tile: multiple of 16 (bf16 sublane packing); multiple of 128 when big."""
    tm = min(target, _round_up(m, 16))
    if tm >= 128:
        tm -= tm % 128
    return max(tm, 16)


def _physical_vmem_bytes():
    try:
        return int(pltpu.get_tpu_info().vmem_capacity_bytes)
    except Exception:  # conservative fallback = v7x per-TC VMEM
        return 64 * _MIB


def _vmem_limit(need_bytes):
    phys = _physical_vmem_bytes()
    cap = max(16 * _MIB, phys - 8 * _MIB)          # headroom below physical VMEM
    return int(min(cap, max(32 * _MIB, need_bytes + 4 * _MIB)))


# ---------------------------------------------------------------------------
# Pallas kernels
# ---------------------------------------------------------------------------
def _output_layer_kernel(x_ref, w_ref, b_ref, o_ref, acc_ref):
    """One (tm, tn) logits tile, accumulated over the E (k) grid axis.

    x: (tm, tk) bf16, w: (tk, tn) bf16, b: (1, tn) f32 -> o: (tm, tn)
    """
    k = pl.program_id(2)

    @pl.when(k == 0)
    def _init():
        acc_ref[...] = jnp.zeros_like(acc_ref)

    acc_ref[...] += jnp.dot(
        x_ref[...], w_ref[...], preferred_element_type=jnp.float32
    )

    @pl.when(k == pl.num_programs(2) - 1)
    def _finalize():
        o_ref[...] = (acc_ref[...] + b_ref[...]).astype(o_ref.dtype)


def _log_softmax_kernel(x_ref, o_ref):
    # numerically-stable log-softmax over the last (lane / vocab) axis
    x = x_ref[...].astype(jnp.float32)
    m = jnp.max(x, axis=-1, keepdims=True)
    s = x - m
    lse = jnp.log(jnp.sum(jnp.exp(s), axis=-1, keepdims=True))
    o_ref[...] = (s - lse).astype(o_ref.dtype)


def _softmax_kernel(x_ref, o_ref):
    x = x_ref[...].astype(jnp.float32)
    m = jnp.max(x, axis=-1, keepdims=True)
    e = jnp.exp(x - m)
    denom = jnp.sum(e, axis=-1, keepdims=True)
    # exact divide (rows sum to 1 within output-dtype rounding); the kernel is
    # mem-bound so the extra VALU/EUP work is free.
    o_ref[...] = (e / denom).astype(o_ref.dtype)


# ---------------------------------------------------------------------------
# Wrappers around pallas_call
# ---------------------------------------------------------------------------
def output_layer_pallas(
    x2d,
    w_padded,
    b_padded,
    *,
    tn,
    tk,
    n_valid_cols,
    out_dtype=jnp.bfloat16,
    tm_target=512,
    weight_buffers=2,
):
    """Tiled output projection: (M, E) @ (Ep, Vp) + b -> (M, n_valid_cols).

    `w_padded` / `b_padded` are pre-padded to multiples of (tk, tn) and
    pre-cast to bf16 at module init, so no full-weight HBM copy happens per
    forward.  Reduction axis (E) is last in the grid; fp32 VMEM accumulator
    with pl.when init/finalize.
    """
    M, E = x2d.shape
    Ep, Vp = w_padded.shape
    assert Vp % tn == 0 and Ep % tk == 0 and b_padded.shape == (1, Vp)

    tm = _pick_tm(M, tm_target)
    Mp = _round_up(M, tm)

    x_p = x2d.astype(jnp.bfloat16)
    if (Mp, Ep) != (M, E):
        # cheap (M, E)-sized pad; padded E rows of W are zero -> contribute 0.
        x_p = jnp.pad(x_p, ((0, Mp - M), (0, Ep - E)))

    out_bytes = jnp.dtype(out_dtype).itemsize
    vmem_need = (
        2 * tm * tk * 2                 # x tile, double-buffered
        + weight_buffers * tk * tn * 2  # w tile(s)
        + 2 * tn * 4                    # bias
        + 2 * tm * tn * out_bytes       # out tile
        + tm * tn * 4                   # fp32 accumulator scratch
    )
    vmem_limit = _vmem_limit(vmem_need)

    gi, gj, gk = Mp // tm, Vp // tn, Ep // tk
    cost = pl.CostEstimate(
        flops=2 * Mp * Ep * Vp,
        transcendentals=0,
        # actual HBM traffic incl. re-streaming: w re-read per i block,
        # x re-read per j block.
        bytes_accessed=(Mp * Ep * 2) * gj
        + (Ep * Vp * 2) * gi
        + Vp * 4 * gi
        + Mp * Vp * out_bytes,
    )

    w_spec_kwargs = {}
    if weight_buffers != 2:
        # e.g. 3 on v5e: deeper weight pipeline hides DMA jitter for ~tk*tn*2 B.
        w_spec_kwargs["pipeline_mode"] = pl.Buffered(weight_buffers)

    out = pl.pallas_call(
        _output_layer_kernel,
        out_shape=jax.ShapeDtypeStruct((Mp, Vp), out_dtype),
        grid_spec=pltpu.PrefetchScalarGridSpec(
            num_scalar_prefetch=0,
            grid=(gi, gj, gk),
            in_specs=[
                pl.BlockSpec((tm, tk), lambda i, j, k: (i, k)),
                pl.BlockSpec((tk, tn), lambda i, j, k: (k, j), **w_spec_kwargs),
                pl.BlockSpec((1, tn), lambda i, j, k: (0, j)),
            ],
            out_specs=pl.BlockSpec((tm, tn), lambda i, j, k: (i, j)),
            scratch_shapes=[pltpu.VMEM((tm, tn), jnp.float32)],
        ),
        compiler_params=pltpu.CompilerParams(
            dimension_semantics=("parallel", "parallel", "arbitrary"),
            vmem_limit_bytes=vmem_limit,
        ),
        cost_estimate=cost,
    )(x_p, w_padded, b_padded)

    return out[:M, :n_valid_cols]


def _rowwise_norm_pallas(logits2d, kernel_fn, *, out_dtype=None, tm_target=512):
    """(log_)softmax over the last axis, tiled over rows with a full-V block.

    The row tile is derived from the VMEM budget (a fixed full-V f32 block at
    real vocab sizes would not fit v7x's 64 MiB) and split into >=2 blocks for
    small M so both v7x TensorCores get work.
    """
    M, V = logits2d.shape
    out_dtype = logits2d.dtype if out_dtype is None else out_dtype
    in_b = logits2d.dtype.itemsize
    out_b = jnp.dtype(out_dtype).itemsize

    phys = _physical_vmem_bytes()
    budget = max(8 * _MIB, phys // 2)               # keep double-buffering alive
    # per-row VMEM: double-buffered in/out blocks + ~3 fp32 temporaries
    per_row = 2 * V * (in_b + out_b) + 3 * V * 4
    tm = min(tm_target, max(8, (budget // per_row) // 8 * 8))
    tm = min(tm, _round_up(M, 8))
    # v7x has 2 TensorCores: ensure the "parallel" row axis has >=2 blocks.
    if tm >= _round_up(M, 8) and M > 8:
        tm = max(8, _round_up((M + 1) // 2, 8))
    Mp = _round_up(M, tm)

    x_p = logits2d if Mp == M else jnp.pad(logits2d, ((0, Mp - M), (0, 0)))

    vmem_limit = _vmem_limit(per_row * tm)
    cost = pl.CostEstimate(
        flops=5 * Mp * V,
        transcendentals=Mp * V,
        bytes_accessed=Mp * V * (in_b + out_b),
    )

    out = pl.pallas_call(
        kernel_fn,
        out_shape=jax.ShapeDtypeStruct((Mp, V), out_dtype),
        grid=(Mp // tm,),
        in_specs=[pl.BlockSpec((tm, V), lambda i: (i, 0))],
        out_specs=pl.BlockSpec((tm, V), lambda i: (i, 0)),
        compiler_params=pltpu.CompilerParams(
            dimension_semantics=("parallel",),
            vmem_limit_bytes=vmem_limit,
        ),
        cost_estimate=cost,
    )(x_p)
    return out[:M]


# ---------------------------------------------------------------------------
# BaseDecoder equivalent
# ---------------------------------------------------------------------------
class BaseDecoderPallas:
    """Concrete, minimal instantiation of metaseq BaseDecoder on TPU/Pallas."""

    def __init__(
        self,
        vocab_size,
        embed_dim,
        key,
        *,
        logits_dtype=jnp.bfloat16,
        tm_target=512,
        tn_target=1024,
        tk_target=512,
        weight_buffers=2,
    ):
        self.vocab_size = vocab_size
        self.embed_dim = embed_dim
        # bf16 logits halve the (M, V) writeback and the mem-bound softmax
        # stream; pass jnp.float32 if exact fp32 logits are needed downstream.
        self.logits_dtype = logits_dtype
        self.tm_target = tm_target
        self.weight_buffers = weight_buffers  # set 3 on v5e (slower HBM)

        k_emb, k_out, _ = jax.random.split(key, 3)
        # bf16 parameters: half the gather / weight-stream HBM traffic and
        # native MXU operand precision (fp32 accumulate inside the kernel).
        self.embed_tokens = (
            jax.random.normal(k_emb, (vocab_size, embed_dim), jnp.float32) * 0.02
        ).astype(jnp.bfloat16)
        self.out_proj_w = (
            jax.random.normal(k_out, (embed_dim, vocab_size), jnp.float32) * 0.02
        ).astype(jnp.bfloat16)
        self.out_proj_b = jnp.zeros((vocab_size,), jnp.float32)

        # ---- tile sizes & cached padded operands (hoisted out of forward) --
        self._tn = _pick_tile(vocab_size, tn_target, 128)
        self._tk = _pick_tile(embed_dim, tk_target, 128)
        vp = _round_up(vocab_size, self._tn)
        ep = _round_up(embed_dim, self._tk)
        self._w_padded = jnp.pad(
            self.out_proj_w, ((0, ep - embed_dim), (0, vp - vocab_size))
        )
        self._b_padded = jnp.pad(
            self.out_proj_b.reshape(1, vocab_size), ((0, 0), (0, vp - vocab_size))
        )

    # ---- BaseDecoder API ---------------------------------------------------
    def extract_features(self, prev_output_tokens):
        # (B, T) int32 -> (B, T, E) bf16.  The gather is glue; the hot paths
        # (matmul / softmax reduction) run inside Pallas kernels.
        # TODO(synk): fuse the gather into the matmul's x BlockSpec via
        # PrefetchScalarGridSpec + pl.Element row index_map to skip the (M, E)
        # HBM round trip entirely.
        feats = jnp.take(self.embed_tokens, prev_output_tokens, axis=0)
        extra = {"inner_states": None}
        return feats, extra

    def output_layer(self, features):
        B, T, E = features.shape
        x2d = features.reshape(B * T, E)
        logits2d = output_layer_pallas(
            x2d,
            self._w_padded,
            self._b_padded,
            tn=self._tn,
            tk=self._tk,
            n_valid_cols=self.vocab_size,
            out_dtype=self.logits_dtype,
            tm_target=self.tm_target,
            weight_buffers=self.weight_buffers,
        )
        return logits2d.reshape(B, T, self.vocab_size)

    def forward(self, prev_output_tokens):
        x, extra = self.extract_features(prev_output_tokens)
        x = self.output_layer(x)
        return x, extra

    __call__ = forward

    def get_normalized_probs(self, logits, log_probs):
        # TODO(synk): when only normalized probs are needed, fuse an online
        # softmax over the V-tile axis into the matmul epilogue (saves one
        # full (M, V) HBM read+write).
        B, T, V = logits.shape
        flat = logits.reshape(B * T, V)
        kern = _log_softmax_kernel if log_probs else _softmax_kernel
        out = _rowwise_norm_pallas(flat, kern, out_dtype=logits.dtype)
        return out.reshape(B, T, V)

    def max_positions(self):
        return 1000000.0


# ---------------------------------------------------------------------------
if __name__ == "__main__":
    key = jax.random.PRNGKey(0)
    k_params, k_tok = jax.random.split(key)

    batch, tgt_len, embed_dim, vocab = 2, 8, 128, 256
    decoder = BaseDecoderPallas(vocab, embed_dim, k_params)

    prev_output_tokens = jax.random.randint(
        k_tok, (batch, tgt_len), 0, vocab, dtype=jnp.int32
    )

    logits, extra = decoder(prev_output_tokens)
    log_probs = decoder.get_normalized_probs(logits, log_probs=True)
    probs = decoder.get_normalized_probs(logits, log_probs=False)
    jax.block_until_ready((logits, log_probs, probs))

    # ---- sanity checks against a pure-JAX reference --------------------------
    assert logits.shape == (batch, tgt_len, vocab)
    assert logits.dtype == decoder.logits_dtype

    feats = jnp.take(decoder.embed_tokens, prev_output_tokens, axis=0)
    ref_logits = (
        feats.reshape(-1, embed_dim).astype(jnp.float32)
        @ decoder.out_proj_w.astype(jnp.float32)
        + decoder.out_proj_b
    ).reshape(batch, tgt_len, vocab)

    logits_f32 = logits.astype(jnp.float32)
    # bf16 operands + fp32 MXU accumulation vs XLA fp32 dot, plus bf16 output
    # rounding -> small deltas only.
    assert jnp.allclose(logits_f32, ref_logits, atol=1e-3, rtol=2e-2)

    ref_lp = jax.nn.log_softmax(logits_f32, axis=-1)
    ref_p = jax.nn.softmax(logits_f32, axis=-1)
    # normalized-prob outputs are bf16 (mem-bound path): tolerances track bf16
    # output rounding.
    assert jnp.allclose(log_probs.astype(jnp.float32), ref_lp, atol=5e-2, rtol=1e-2)
    assert jnp.allclose(probs.astype(jnp.float32), ref_p, atol=2e-3, rtol=2e-2)
    assert jnp.allclose(jnp.sum(probs.astype(jnp.float32), axis=-1), 1.0, atol=1e-2)

    print("KERNEL_OK")
</pallas_src>

<mosaic_0001>
module attributes {stable_mosaic.version = 11 : i64} {
  func.func @_output_layer_kernel(%arg0: i32, %arg1: i32, %arg2: i32, %arg3: memref<16x128xbf16, #tpu.memory_space<vmem>>, %arg4: memref<128x256xbf16, #tpu.memory_space<vmem>>, %arg5: memref<1x256xf32, #tpu.memory_space<vmem>>, %arg6: memref<16x256xbf16, #tpu.memory_space<vmem>>, %arg7: memref<16x256xf32, #tpu.memory_space<vmem>>) attributes {dimension_semantics = [#tpu.dimension_semantics<parallel>, #tpu.dimension_semantics<parallel>, #tpu.dimension_semantics<arbitrary>], iteration_bounds = array<i64: 1, 1, 1>, scalar_prefetch = 0 : i64, scratch_operands = 1 : i64, tpu.core_type = #tpu.core_type<tc>, window_params = [{transform_indices = @transform_0, window_bounds = array<i64: 16, 128>}, {transform_indices = @transform_1, window_bounds = array<i64: 128, 256>}, {transform_indices = @transform_2, window_bounds = array<i64: 1, 256>}, {transform_indices = @transform_3, window_bounds = array<i64: 16, 256>}]} {
    %c0_i32 = arith.constant 0 : i32
    %0 = arith.cmpi eq, %arg2, %c0_i32 : i32
    %1 = arith.extui %0 : i1 to i32
    %c0_i32_0 = arith.constant 0 : i32
    %2 = arith.cmpi ne, %1, %c0_i32_0 : i32
    scf.if %2 {
      %cst_10 = arith.constant 0.000000e+00 : f32
      %12 = vector.broadcast %cst_10 : f32 to vector<16x256xf32>
      %c0_11 = arith.constant 0 : index
      %c0_12 = arith.constant 0 : index
      %13 = vector.load %arg7[%c0_11, %c0_12] : memref<16x256xf32, #tpu.memory_space<vmem>>, vector<16x256xf32>
      tpu.vector_store %arg7[%c0_11, %c0_12], %12 {strides = array<i32>} : memref<16x256xf32, #tpu.memory_space<vmem>>, vector<16x256xf32>,
    } else {
    }
    %c0 = arith.constant 0 : index
    %c0_1 = arith.constant 0 : index
    %3 = vector.load %arg7[%c0, %c0_1] : memref<16x256xf32, #tpu.memory_space<vmem>>, vector<16x256xf32>
    %c0_2 = arith.constant 0 : index
    %c0_3 = arith.constant 0 : index
    %4 = vector.load %arg3[%c0_2, %c0_3] : memref<16x128xbf16, #tpu.memory_space<vmem>>, vector<16x128xbf16>
    %c0_4 = arith.constant 0 : index
    %c0_5 = arith.constant 0 : index
    %5 = vector.load %arg4[%c0_4, %c0_5] : memref<128x256xbf16, #tpu.memory_space<vmem>>, vector<128x256xbf16>
    %cst = arith.constant dense<0.000000e+00> : vector<16x256xf32>
    %6 = tpu.matmul %4, %5, %cst {dimension_numbers = #tpu.dot_dimension_numbers<[1], [0], [0], [1], [0, 0, 1, 1], [], []>} : vector<16x128xbf16>, vector<128x256xbf16>, vector<16x256xf32> -> vector<16x256xf32>
    %7 = arith.addf %3, %6 : vector<16x256xf32>
    %c0_6 = arith.constant 0 : index
    %c0_7 = arith.constant 0 : index
    %8 = vector.load %arg7[%c0_6, %c0_7] : memref<16x256xf32, #tpu.memory_space<vmem>>, vector<16x256xf32>
    tpu.vector_store %arg7[%c0_6, %c0_7], %7 {strides = array<i32>} : memref<16x256xf32, #tpu.memory_space<vmem>>, vector<16x256xf32>,
    %c0_i32_8 = arith.constant 0 : i32
    %9 = arith.cmpi eq, %arg2, %c0_i32_8 : i32
    %10 = arith.extui %9 : i1 to i32
    %c0_i32_9 = arith.constant 0 : i32
    %11 = arith.cmpi ne, %10, %c0_i32_9 : i32
    scf.if %11 {
      %c0_10 = arith.constant 0 : index
      %c0_11 = arith.constant 0 : index
      %12 = vector.load %arg7[%c0_10, %c0_11] : memref<16x256xf32, #tpu.memory_space<vmem>>, vector<16x256xf32>
      %c0_12 = arith.constant 0 : index
      %c0_13 = arith.constant 0 : index
      %13 = vector.load %arg5[%c0_12, %c0_13] : memref<1x256xf32, #tpu.memory_space<vmem>>, vector<1x256xf32>
      %14 = vector.broadcast %13 : vector<1x256xf32> to vector<16x256xf32>
      %15 = arith.addf %12, %14 : vector<16x256xf32>
      %16 = arith.truncf %15 : vector<16x256xf32> to vector<16x256xbf16>
      %c0_14 = arith.constant 0 : index
      %c0_15 = arith.constant 0 : index
      %17 = vector.load %arg6[%c0_14, %c0_15] : memref<16x256xbf16, #tpu.memory_space<vmem>>, vector<16x256xbf16>
      tpu.vector_store %arg6[%c0_14, %c0_15], %16 {strides = array<i32>} : memref<16x256xbf16, #tpu.memory_space<vmem>>, vector<16x256xbf16>,
    } else {
    }
    return
  }
  func.func @transform_0(%arg0: i32, %arg1: i32, %arg2: i32) -> (i32, i32) {
    %c0_i32 = arith.constant 0 : i32
    return %arg0, %arg2 : i32, i32
  }
  func.func @transform_1(%arg0: i32, %arg1: i32, %arg2: i32) -> (i32, i32) {
    %c0_i32 = arith.constant 0 : i32
    return %arg2, %arg1 : i32, i32
  }
  func.func @transform_2(%arg0: i32, %arg1: i32, %arg2: i32) -> (i32, i32) {
    %c0_i32 = arith.constant 0 : i32
    %c0_i32_0 = arith.constant 0 : i32
    return %c0_i32, %arg1 : i32, i32
  }
  func.func @transform_3(%arg0: i32, %arg1: i32, %arg2: i32) -> (i32, i32) {
    %c0_i32 = arith.constant 0 : i32
    return %arg0, %arg1 : i32, i32
  }
}

</mosaic_0001>

<llo_original>
// kernel: tpu_custom_call.1
$region0: #{tpu_custom_call.1}
  #allocation0 [shape = 'u32[]', space=smem, size = 0x4, offset = 0x4, fixed_abs, tag = 'smem constant byte address 0x4 - core index']
  #allocation1 [shape = 'u32[144,128]{1,0:T(1,128)}', space=vmem, size = 0x12000, scoped, tag = 'internal scratch']
  #allocation2 [shape = 'f32[16,256]{1,0:T(8,128)}', space=vmem, size = 0x4000, scoped, tag = 'scratch operand']
  %s0 = inlined_call_operand.hbm [shape: bf16[16,128], index: 0, kind: input, shape index: {}]
  %s1 = inlined_call_operand.hbm [shape: bf16[128,256], index: 1, kind: input, shape index: {}]
  %s2 = inlined_call_operand.vmem [shape: f32[1,256], index: 2, kind: input, shape index: {}]
  %s3 = inlined_call_operand.hbm [shape: bf16[16,256], index: 3, kind: output, shape index: {}]
  %s4 = sld [smem:[#allocation0]]
  $region38: #{tpu_custom_call.1} parent=0
    _
  %s6 = ssub.s32 1, %s4
  %s7 = scalar_select 0, %s6, %s4
  $region1: #{tpu_custom_call.1} parent=0
    #allocation3 [shape = 'u8[4096]{0}', space=vmem, size = 0x1000, scoped, tag = 'input window, operand 0, single buffered']
    #allocation4 [shape = 's32[1]{0}', space=sflag, size = 0x4, scoped, tag = 'scoped memory for tpu_custom_call.1']
    #allocation5 [shape = 's32[1]{0}', space=sflag, size = 0x4, scoped, tag = 'scoped memory for tpu_custom_call.1']
    #allocation6 [shape = 'u8[65536]{0}', space=vmem, size = 0x10000, scoped, tag = 'input window, operand 1, single buffered']
    #allocation7 [shape = 's32[1]{0}', space=sflag, size = 0x4, scoped, tag = 'scoped memory for tpu_custom_call.1']
    #allocation8 [shape = 'u8[8192]{0}', space=vmem, size = 0x2000, scoped, tag = 'output window, operand 0, single buffered']
    %8 = vsyncpa [#allocation4], 0
    %9 = vsyncpa [#allocation7], 0
    %10 = vsyncpa [#allocation5], 0
    // Predicated region
    $region2: #{tpu_custom_call.1} parent=1 // pred_check
      _
    $region3: #{tpu_custom_call.1} parent=1 // pred_check_branch
      %12 = sbr.rel (0) target = $region5
    $region4: #{tpu_custom_call.1} parent=1 // pred_region
      %s14 = ssub.s32 128, 128
      %15 = vsyncadd [#allocation4], %s14
      %s16 = sshll.u32 [#allocation3], 4
      %s17 = int_to_ptr.vmem [resolvable:$true] %s16
      %22 = dma.hbm_to_vmem [thread:$0]  %s0, 128, %s17, [#allocation4], 64, 64, 4
    $region5: #{tpu_custom_call.1} parent=1 // pred_fallthru
      _
    // Predicated region
    $region6: #{tpu_custom_call.1} parent=1 // pred_check
      _
    $region7: #{tpu_custom_call.1} parent=1 // pred_check_branch
      %24 = sbr.rel (0) target = $region9
    $region8: #{tpu_custom_call.1} parent=1 // pred_region
      %s26 = ssub.s32 2048, 2048
      %27 = vsyncadd [#allocation7], %s26
      %s28 = sshll.u32 [#allocation6], 4
      %s29 = int_to_ptr.vmem [resolvable:$true] %s28
      %34 = dma.hbm_to_vmem [thread:$0]  %s1, 2048, %s29, [#allocation7], 128, 128, 8
    $region9: #{tpu_custom_call.1} parent=1 // pred_fallthru
      _
    // Predicated region
    $region10: #{tpu_custom_call.1} parent=1 // pred_check
      _
    $region11: #{tpu_custom_call.1} parent=1 // pred_check_branch
      %36 = sbr.rel (0) target = $region13
    $region12: #{tpu_custom_call.1} parent=1 // pred_region
      _
    $region13: #{tpu_custom_call.1} parent=1 // pred_fallthru
      _
    // Predicated region
    $region14: #{tpu_custom_call.1} parent=1 // pred_check
      _
    $region15: #{tpu_custom_call.1} parent=1 // pred_check_branch
      %38 = sbr.rel (0) target = $region17
    $region16: #{tpu_custom_call.1} parent=1 // pred_region
      %39 = dma.done [#allocation4], 128
    $region17: #{tpu_custom_call.1} parent=1 // pred_fallthru
      _
    // Predicated region
    $region18: #{tpu_custom_call.1} parent=1 // pred_check
      _
    $region19: #{tpu_custom_call.1} parent=1 // pred_check_branch
      %41 = sbr.rel (0) target = $region21
    $region20: #{tpu_custom_call.1} parent=1 // pred_region
      %42 = dma.done [#allocation7], 2048
    $region21: #{tpu_custom_call.1} parent=1 // pred_fallthru
      _
    %p44 = scmp.eq.s32.totalorder 0, 0
    // Predicated region
    $region22: #{tpu_custom_call.1} parent=1 // pred_check
      %p45 = pneg %p44
    $region23: #{tpu_custom_call.1} parent=1 // pred_check_branch
      %47 = sbr.rel (%p45) target = $region25
    $region24: #{tpu_custom_call.1} parent=1 // pred_region
      %48 = vst [vmem:[#allocation2] sm:$0xff] 0.0
      %49 = vst [vmem:[#allocation2 + $0x8] sm:$0xff] 0.0
      %50 = vst [vmem:[#allocation2 + $0x10] sm:$0xff] 0.0
      %51 = vst [vmem:[#allocation2 + $0x18] sm:$0xff] 0.0
    $region25: #{tpu_custom_call.1} parent=1 // pred_fallthru
      _
    %v52 = vld [vmem:[#allocation2] sm:$0xff]
    %v53 = vld [vmem:[#allocation2 + $0x8] sm:$0xff]
    %v54 = vld [vmem:[#allocation2 + $0x10] sm:$0xff]
    %v55 = vld [vmem:[#allocation2 + $0x18] sm:$0xff]
    %v56 = vld [vmem:[#allocation3] sm:$0xf]
    %v57 = vld [vmem:[#allocation3 + $0x4] sm:$0xf]
    %v58 = vld [vmem:[#allocation6] sm:$0xff]
    %v59 = vld [vmem:[#allocation6 + $0x8] sm:$0xff]
    %v60 = vld [vmem:[#allocation6 + $0x10] sm:$0xff]
    %v61 = vld [vmem:[#allocation6 + $0x18] sm:$0xff]
    %v62 = vld [vmem:[#allocation6 + $0x20] sm:$0xff]
    %v63 = vld [vmem:[#allocation6 + $0x28] sm:$0xff]
    %v64 = vld [vmem:[#allocation6 + $0x30] sm:$0xff]
    %v65 = vld [vmem:[#allocation6 + $0x38] sm:$0xff]
    %v66 = vld [vmem:[#allocation6 + $0x40] sm:$0xff]
    %v67 = vld [vmem:[#allocation6 + $0x48] sm:$0xff]
    %v68 = vld [vmem:[#allocation6 + $0x50] sm:$0xff]
    %v69 = vld [vmem:[#allocation6 + $0x58] sm:$0xff]
    %v70 = vld [vmem:[#allocation6 + $0x60] sm:$0xff]
    %v71 = vld [vmem:[#allocation6 + $0x68] sm:$0xff]
    %v72 = vld [vmem:[#allocation6 + $0x70] sm:$0xff]
    %v73 = vld [vmem:[#allocation6 + $0x78] sm:$0xff]
    %v76 = vunpack.c.l.b16 %v56
    %v77 = vunpack.c.l.b16 %v57
    %v78 = vpack.c.b16 %v77, %v76
    %v96 = vunpack.c.l.b16 %v58
    %v97 = vunpack.c.h.b16 %v58
    %v98 = vunpack.c.l.b16 %v59
    %v99 = vunpack.c.h.b16 %v59
    %v100 = vunpack.c.l.b16 %v60
    %v101 = vunpack.c.h.b16 %v60
    %v102 = vunpack.c.l.b16 %v61
    %v103 = vunpack.c.h.b16 %v61
    %v104 = vunpack.c.l.b16 %v62
    %v105 = vunpack.c.h.b16 %v62
    %v106 = vunpack.c.l.b16 %v63
    %v107 = vunpack.c.h.b16 %v63
    %v108 = vunpack.c.l.b16 %v64
    %v109 = vunpack.c.h.b16 %v64
    %v110 = vunpack.c.l.b16 %v65
    %v111 = vunpack.c.h.b16 %v65
    %v112 = vunpack.c.l.b16 %v66
    %v113 = vunpack.c.h.b16 %v66
    %v114 = vunpack.c.l.b16 %v67
    %v115 = vunpack.c.h.b16 %v67
    %v116 = vunpack.c.l.b16 %v68
    %v117 = vunpack.c.h.b16 %v68
    %v118 = vunpack.c.l.b16 %v69
    %v119 = vunpack.c.h.b16 %v69
    %v120 = vunpack.c.l.b16 %v70
    %v121 = vunpack.c.h.b16 %v70
    %v122 = vunpack.c.l.b16 %v71
    %v123 = vunpack.c.h.b16 %v71
    %v124 = vunpack.c.l.b16 %v72
    %v125 = vunpack.c.h.b16 %v72
    %v126 = vunpack.c.l.b16 %v73
    %v127 = vunpack.c.h.b16 %v73
    %v128 = vpack.c.b16 %v98, %v96
    %v129 = vpack.c.b16 %v99, %v97
    %v130 = vpack.c.b16 %v102, %v100
    %v131 = vpack.c.b16 %v103, %v101
    %v132 = vpack.c.b16 %v106, %v104
    %v133 = vpack.c.b16 %v107, %v105
    %v134 = vpack.c.b16 %v110, %v108
    %v135 = vpack.c.b16 %v111, %v109
    %v136 = vpack.c.b16 %v114, %v112
    %v137 = vpack.c.b16 %v115, %v113
    %v138 = vpack.c.b16 %v118, %v116
    %v139 = vpack.c.b16 %v119, %v117
    %v140 = vpack.c.b16 %v122, %v120
    %v141 = vpack.c.b16 %v123, %v121
    %v142 = vpack.c.b16 %v126, %v124
    %v143 = vpack.c.b16 %v127, %v125
    %160 = vmatprep.subr.bf16.mxu0 %v129
    %161 = vmatpush1.bf16.msra.mxu0 %v128
    %162 = vmatprep.subr.bf16.mxu0 %v131
    %163 = vmatpush1.bf16.msra.mxu0 %v130
    %164 = vmatprep.subr.bf16.mxu0 %v133
    %165 = vmatpush1.bf16.msra.mxu0 %v132
    %166 = vmatprep.subr.bf16.mxu0 %v135
    %167 = vmatpush1.bf16.msra.mxu0 %v134
    %168 = vmatprep.subr.bf16.mxu0 %v137
    %169 = vmatpush1.bf16.msra.mxu0 %v136
    %170 = vmatprep.subr.bf16.mxu0 %v139
    %171 = vmatpush1.bf16.msra.mxu0 %v138
    %172 = vmatprep.subr.bf16.mxu0 %v141
    %173 = vmatpush1.bf16.msra.mxu0 %v140
    %174 = vmatprep.subr.bf16.mxu0 %v143
    %175 = vmatpush1.bf16.msra.mxu0 %v142
    %176 = vmatprep.subr.bf16.mxu0 0
    %177 = vmatpush1.bf16.msra.mxu0 0
    %178 = vmatprep.subr.bf16.mxu0 0
    %179 = vmatpush1.bf16.msra.mxu0 0
    %180 = vmatprep.subr.bf16.mxu0 0
    %181 = vmatpush1.bf16.msra.mxu0 0
    %182 = vmatprep.subr.bf16.mxu0 0
    %183 = vmatpush1.bf16.msra.mxu0 0
    %184 = vmatprep.subr.bf16.mxu0 0
    %185 = vmatpush1.bf16.msra.mxu0 0
    %186 = vmatprep.subr.bf16.mxu0 0
    %187 = vmatpush1.bf16.msra.mxu0 0
    %188 = vmatprep.subr.bf16.mxu0 0
    %189 = vmatpush1.bf16.msra.mxu0 0
    %190 = vmatprep.subr.bf16.mxu0 0
    %191 = vmatpush1.bf16.msra.mxu0 0
    %192 = vmatprep.mubr.bf16.mxu0 0
    %193 = vmatmul.mubr.bf16.gmra.mrb[0].mxu0 %v78
    %v194 = vpop.f32.mrb[0].mxu0
    %v195 = vadd.f32 0.0, %v194
    %v196 = vpop.f32.mrb[0].mxu0
    %v197 = vadd.f32 0.0, %v196
    %v198 = vpop.f32.mrb[0].mxu0
    %v199 = vadd.f32 0.0, %v198
    %v200 = vpop.f32.mrb[0].mxu0
    %v201 = vadd.f32 0.0, %v200
    %202 = vdwg.mxu0
    %v203 = vadd.f32 %v52, %v195
    %v204 = vadd.f32 %v53, %v197
    %v205 = vadd.f32 %v54, %v199
    %v206 = vadd.f32 %v55, %v201
    %207 = vst [vmem:[#allocation2] sm:$0xff] %v203
    %208 = vst [vmem:[#allocation2 + $0x8] sm:$0xff] %v204
    %209 = vst [vmem:[#allocation2 + $0x10] sm:$0xff] %v205
    %210 = vst [vmem:[#allocation2 + $0x18] sm:$0xff] %v206
    // Predicated region
    $region26: #{tpu_custom_call.1} parent=1 // pred_check
      %p211 = pneg %p44
    $region27: #{tpu_custom_call.1} parent=1 // pred_check_branch
      %213 = sbr.rel (%p211) target = $region29
    $region28: #{tpu_custom_call.1} parent=1 // pred_region
      %v214 = vld [vmem:[#allocation2] sm:$0xff]
      %v215 = vld [vmem:[#allocation2 + $0x8] sm:$0xff]
      %v216 = vld [vmem:[#allocation2 + $0x10] sm:$0xff]
      %v217 = vld [vmem:[#allocation2 + $0x18] sm:$0xff]
      %v218 = vld [vmem:[%s2] sm:$0x3]
      %v220 = vlaneseq
      %v221 = vshrl.u32 %v220, 7
      %v222 = vsub.s32 0, %v221
      %v223 = vrot.slane %v218, %v222
      %v224 = vlaneseq
      %v225 = vshrl.u32 %v224, 7
      %v226 = vsub.s32 1, %v225
      %v227 = vrot.slane %v218, %v226
      %v230 = vadd.f32 %v214, %v223
      %v231 = vadd.f32 %v215, %v227
      %v232 = vadd.f32 %v216, %v223
      %v233 = vadd.f32 %v217, %v227
      %v234 = vpack.c.bf16 %v232, %v230
      %v235 = vpack.c.bf16 %v233, %v231
      %v238 = vunpack.c.l.b16 %v234
      %v239 = vunpack.c.l.b16 %v235
      %v240 = vunpack.c.h.b16 %v234
      %v241 = vunpack.c.h.b16 %v235
      %v242 = vpack.c.b16 %v239, %v238
      %v243 = vpack.c.b16 %v241, %v240
      %246 = vst [vmem:[#allocation8] sm:$0xff] %v242
      %247 = vst [vmem:[#allocation8 + $0x8] sm:$0xff] %v243
    $region29: #{tpu_custom_call.1} parent=1 // pred_fallthru
      _
    // Predicated region
    $region30: #{tpu_custom_call.1} parent=1 // pred_check
      _
    $region31: #{tpu_custom_call.1} parent=1 // pred_check_branch
      %249 = sbr.rel (0) target = $region33
    $region32: #{tpu_custom_call.1} parent=1 // pred_region
      %s251 = ssub.s32 256, 256
      %252 = vsyncadd [#allocation5], %s251
      %s253 = sshll.u32 [#allocation8], 4
      %s254 = int_to_ptr.vmem [resolvable:$true] %s253
      %259 = dma.vmem_to_hbm [thread:$0]  %s254, 256, %s3, [#allocation5], 128, 128, 8
    $region33: #{tpu_custom_call.1} parent=1 // pred_fallthru
      _
    // Predicated region
    $region34: #{tpu_custom_call.1} parent=1 // pred_check
      _
    $region35: #{tpu_custom_call.1} parent=1 // pred_check_branch
      %261 = sbr.rel (0) target = $region37
    $region36: #{tpu_custom_call.1} parent=1 // pred_region
      %262 = dma.done [#allocation5], 256
    $region37: #{tpu_custom_call.1} parent=1 // pred_fallthru
      _
    %263 = vsyncpa [#allocation4], 1
    %264 = vsyncpa [#allocation7], 1
    %265 = vsyncpa [#allocation5], 1

</llo_original>
